<compile_context>
chip_gen: v7x
topology: tpu7x:2x2x1
jax: 0.10.0
libtpu: 0.0.40
codegen_flags: <defaults>
</compile_context>

<pallas_src>
import functools

import jax
import jax.numpy as jnp
from jax import lax
from jax.experimental import pallas as pl
from jax.experimental.pallas import tpu as pltpu


def _round_up(v, m):
    return (v + m - 1) // m * m


def _saconv_block_kernel(w_ref, b_ref, cr_ref, x_ref, m_ref, xo_ref, mo_ref, *, H, W):
    # w_ref:  (Cout, K)         K = 9*Cin_pad, im2col row order (ky, kx, ci)
    # b_ref:  (Cout, 1)         bias (f32)
    # cr_ref: (2, H*W)          row 0 = w coordinate, row 1 = h coordinate (f32)
    # x_ref:  (B, Cin_pad, L)   flat zero-padded input (matmul dtype), L >= H*W + 2W + 2
    # m_ref:  (B, 1, L)         flat zero-padded mask (f32)
    # xo_ref: (B, Cout, H*W)    relu(conv(x*m) + bias), lane-dense
    # mo_ref: (B, 1, H*W)       3x3 / stride-1 / pad-1 max-pool of the mask
    B = x_ref.shape[0]
    HW = H * W

    wc = cr_ref[0:1, :]                       # (1, HW)
    hc = cr_ref[1:2, :]
    left = wc == 0.0
    right = wc == float(W - 1)
    top = hc == 0.0
    bottom = hc == float(H - 1)

    patches = []
    pooled_all = []
    for b in range(B):
        xm = x_ref[b] * m_ref[b].astype(x_ref.dtype)       # (Cin_pad, L) gated input
        mr = m_ref[b]                                       # (1, L)
        taps = []
        pooled = None
        for ky in range(3):
            for kx in range(3):
                o = ky * W + kx                             # flat tap offset
                t = xm[:, o:o + HW]                         # (Cin_pad, HW) lane slice
                # Row-wrap contamination only happens on the w==0 / w==W-1 columns of
                # the kx=0 / kx=2 taps; zero them (conv uses zero padding).
                if kx == 0:
                    t = jnp.where(left, 0.0, t)
                elif kx == 2:
                    t = jnp.where(right, 0.0, t)
                taps.append(t)

                # Mask max-pool tap with exact torch MaxPool2d(-inf padding) semantics.
                mt = mr[:, o:o + HW]                        # (1, HW)
                inv = None
                if ky == 0:
                    inv = top
                elif ky == 2:
                    inv = bottom
                if kx == 0:
                    inv = left if inv is None else (inv | left)
                elif kx == 2:
                    inv = right if inv is None else (inv | right)
                if inv is not None:
                    mt = jnp.where(inv, -jnp.inf, mt)
                pooled = mt if pooled is None else jnp.maximum(pooled, mt)
        patches.append(jnp.concatenate(taps, axis=0))       # (K, HW)
        pooled_all.append(pooled)

    patch = patches[0] if B == 1 else jnp.concatenate(patches, axis=1)    # (K, B*HW)
    acc = jnp.dot(w_ref[...], patch, preferred_element_type=jnp.float32)  # (Cout, B*HW)
    out = jnp.maximum(acc + b_ref[...], 0.0)                              # bias + ReLU (f32)
    for b in range(B):
        xo_ref[b] = out[:, b * HW:(b + 1) * HW].astype(xo_ref.dtype)
        mo_ref[b] = pooled_all[b].astype(mo_ref.dtype)


def saconv_block(x_nchw, m_nchw, weight_oihw, bias, *, batch_block=1,
                 matmul_dtype=jnp.bfloat16):
    """SAConvBlock forward. NCHW in / NCHW out.

    matmul_dtype: dtype of the MXU operands (bf16 recommended on v6e/v7x);
                  accumulation is always f32.  Pass jnp.float32 for exact f32 math.
    """
    N, Cin, H, W = x_nchw.shape
    Cout = weight_oihw.shape[0]
    assert weight_oihw.shape == (Cout, Cin, 3, 3)
    assert m_nchw.shape == (N, 1, H, W)
    assert N % batch_block == 0
    B = batch_block
    HW = H * W
    Cin_pad = _round_up(Cin, 8)              # 8-sublane aligned tap groups
    K = 9 * Cin_pad
    L = _round_up(HW + 2 * W + 2, 128)       # flat padded length (lane-dense)
    mm_dtype = x_nchw.dtype if matmul_dtype is None else matmul_dtype

    # Flat zero-padded buffers: [W+1 zeros][row-major H*W image][zeros up to L].
    pad_lo = W + 1
    pad_hi = L - HW - pad_lo
    x_buf = jnp.pad(x_nchw.reshape(N, Cin, HW),
                    ((0, 0), (0, Cin_pad - Cin), (pad_lo, pad_hi))).astype(mm_dtype)
    m_buf = jnp.pad(m_nchw.reshape(N, 1, HW), ((0, 0), (0, 0), (pad_lo, pad_hi)))

    # Weight: OIHW -> (Cout, 9*Cin_pad), im2col row order (ky, kx, ci), zero-padded ci.
    w2 = jnp.transpose(weight_oihw, (0, 2, 3, 1))                       # (Cout, 3, 3, Cin)
    w2 = jnp.pad(w2, ((0, 0), (0, 0), (0, 0), (0, Cin_pad - Cin)))
    w2 = w2.reshape(Cout, K).astype(mm_dtype)
    b2 = bias.reshape(Cout, 1).astype(jnp.float32)

    # Per-lane (w, h) coordinates for border masking (tiny constant input).
    idx = jnp.arange(HW, dtype=jnp.int32)
    colrow = jnp.stack([(idx % W).astype(jnp.float32),
                        (idx // W).astype(jnp.float32)], axis=0)        # (2, HW)

    out_x_flat, out_m_flat = pl.pallas_call(
        functools.partial(_saconv_block_kernel, H=H, W=W),
        out_shape=(
            jax.ShapeDtypeStruct((N, Cout, HW), x_nchw.dtype),
            jax.ShapeDtypeStruct((N, 1, HW), m_nchw.dtype),
        ),
        grid=(N // B,),
        in_specs=[
            pl.BlockSpec((Cout, K), lambda n: (0, 0)),          # weights (replicated)
            pl.BlockSpec((Cout, 1), lambda n: (0, 0)),          # bias
            pl.BlockSpec((2, HW), lambda n: (0, 0)),            # (w, h) lane coordinates
            pl.BlockSpec((B, Cin_pad, L), lambda n: (n, 0, 0)),  # flat x
            pl.BlockSpec((B, 1, L), lambda n: (n, 0, 0)),        # flat mask
        ],
        out_specs=[
            pl.BlockSpec((B, Cout, HW), lambda n: (n, 0, 0)),    # lane-dense conv out
            pl.BlockSpec((B, 1, HW), lambda n: (n, 0, 0)),       # lane-dense pooled mask
        ],
        compiler_params=pltpu.CompilerParams(dimension_semantics=("parallel",)),
    )(w2, b2, colrow, x_buf, m_buf)

    # Free (contiguous) reshapes back to NCHW — no transposes needed with this layout.
    return out_x_flat.reshape(N, Cout, H, W), out_m_flat.reshape(N, 1, H, W)


def _reference(x_nchw, m_nchw, weight_oihw, bias):
    """Pure-JAX reference of the same forward pass (correctness check)."""
    xm = x_nchw * m_nchw
    conv = lax.conv_general_dilated(
        xm, weight_oihw, window_strides=(1, 1), padding=((1, 1), (1, 1)),
        dimension_numbers=("NCHW", "OIHW", "NCHW"))
    ref_x = jnp.maximum(conv + bias.reshape(1, -1, 1, 1), 0.0)
    ref_m = lax.reduce_window(
        m_nchw, -jnp.inf, lax.max,
        window_dimensions=(1, 1, 3, 3), window_strides=(1, 1, 1, 1),
        padding=((0, 0), (0, 0), (1, 1), (1, 1)))
    return ref_x, ref_m


if __name__ == "__main__":
    key = jax.random.PRNGKey(0)
    k_x, k_m, k_w, k_b = jax.random.split(key, 4)

    N, Cin, Cout, H, W = 2, 4, 8, 16, 16

    x = jax.random.normal(k_x, (N, Cin, H, W), dtype=jnp.float32)
    # Sparse binary mask with a single channel (the module asserts m.size(1) == 1).
    m = (jax.random.uniform(k_m, (N, 1, H, W)) > 0.5).astype(jnp.float32)

    # kaiming_normal_(mode='fan_out', nonlinearity='relu') => std = sqrt(2 / (Cout*3*3)).
    fan_out = Cout * 3 * 3
    weight = jax.random.normal(k_w, (Cout, Cin, 3, 3), dtype=jnp.float32) * jnp.sqrt(2.0 / fan_out)
    # Module inits bias to zeros; use a small nonzero bias so the bias path is exercised.
    bias = 0.1 * jax.random.normal(k_b, (Cout,), dtype=jnp.float32)

    ref_x, ref_m = _reference(x, m, weight, bias)

    # Exact-math run (f32 MXU operands): tight tolerance.
    out_x32, out_m32 = saconv_block(x, m, weight, bias, matmul_dtype=jnp.float32)
    out_x32 = jax.block_until_ready(out_x32)
    out_m32 = jax.block_until_ready(out_m32)
    assert out_x32.shape == (N, Cout, H, W) and out_m32.shape == (N, 1, H, W)
    assert jnp.allclose(out_x32, ref_x, atol=1e-4, rtol=1e-4)
    assert jnp.allclose(out_m32, ref_m, atol=1e-6)

    # Default run (bf16 MXU operands, f32 accumulation): looser tolerance for bf16 rounding.
    out_xbf, out_mbf = saconv_block(x, m, weight, bias)
    out_xbf = jax.block_until_ready(out_xbf)
    out_mbf = jax.block_until_ready(out_mbf)
    assert jnp.allclose(out_xbf, ref_x, atol=5e-2, rtol=5e-2)
    assert jnp.allclose(out_mbf, ref_m, atol=1e-6)

    print("KERNEL_OK")
</pallas_src>

<mosaic_0001>
module attributes {stable_mosaic.version = 11 : i64} {
  func.func @_saconv_block_kernel(%arg0: i32, %arg1: memref<8x72xf32, #tpu.memory_space<vmem>>, %arg2: memref<8x1xf32, #tpu.memory_space<vmem>>, %arg3: memref<2x256xf32, #tpu.memory_space<vmem>>, %arg4: memref<1x8x384xf32, #tpu.memory_space<vmem>>, %arg5: memref<1x1x384xf32, #tpu.memory_space<vmem>>, %arg6: memref<1x8x256xf32, #tpu.memory_space<vmem>>, %arg7: memref<1x1x256xf32, #tpu.memory_space<vmem>>) attributes {dimension_semantics = [#tpu.dimension_semantics<parallel>], iteration_bounds = array<i64: 2>, scalar_prefetch = 0 : i64, scratch_operands = 0 : i64, tpu.core_type = #tpu.core_type<tc>, window_params = [{pipeline_mode = #tpu.pipeline_mode<synchronous>, transform_indices = @transform_0, window_bounds = array<i64: 8, 72>}, {pipeline_mode = #tpu.pipeline_mode<synchronous>, transform_indices = @transform_1, window_bounds = array<i64: 8, 1>}, {pipeline_mode = #tpu.pipeline_mode<synchronous>, transform_indices = @transform_2, window_bounds = array<i64: 2, 256>}, {transform_indices = @transform_3, window_bounds = array<i64: 1, 8, 384>}, {transform_indices = @transform_4, window_bounds = array<i64: 1, 1, 384>}, {transform_indices = @transform_5, window_bounds = array<i64: 1, 8, 256>}, {transform_indices = @transform_6, window_bounds = array<i64: 1, 1, 256>}]} {
    %c0 = arith.constant 0 : index
    %c0_0 = arith.constant 0 : index
    %0 = vector.load %arg3[%c0, %c0_0] : memref<2x256xf32, #tpu.memory_space<vmem>>, vector<1x256xf32>
    %c1 = arith.constant 1 : index
    %c0_1 = arith.constant 0 : index
    %1 = vector.load %arg3[%c1, %c0_1] : memref<2x256xf32, #tpu.memory_space<vmem>>, vector<1x256xf32>
    %cst = arith.constant 0.000000e+00 : f32
    %2 = vector.broadcast %cst : f32 to vector<1x256xf32>
    %3 = arith.cmpf oeq, %0, %2 : vector<1x256xf32>
    %cst_2 = arith.constant 1.500000e+01 : f32
    %4 = vector.broadcast %cst_2 : f32 to vector<1x256xf32>
    %5 = arith.cmpf oeq, %0, %4 : vector<1x256xf32>
    %cst_3 = arith.constant 0.000000e+00 : f32
    %6 = vector.broadcast %cst_3 : f32 to vector<1x256xf32>
    %7 = arith.cmpf oeq, %1, %6 : vector<1x256xf32>
    %cst_4 = arith.constant 1.500000e+01 : f32
    %8 = vector.broadcast %cst_4 : f32 to vector<1x256xf32>
    %9 = arith.cmpf oeq, %1, %8 : vector<1x256xf32>
    %c0_5 = arith.constant 0 : index
    %c0_6 = arith.constant 0 : index
    %c0_7 = arith.constant 0 : index
    %10 = vector.load %arg4[%c0_5, %c0_6, %c0_7] : memref<1x8x384xf32, #tpu.memory_space<vmem>>, vector<1x8x384xf32>
    %11 = vector.shape_cast %10 : vector<1x8x384xf32> to vector<8x384xf32>
    %c0_8 = arith.constant 0 : index
    %c0_9 = arith.constant 0 : index
    %c0_10 = arith.constant 0 : index
    %12 = vector.load %arg5[%c0_8, %c0_9, %c0_10] : memref<1x1x384xf32, #tpu.memory_space<vmem>>, vector<1x1x384xf32>
    %13 = vector.shape_cast %12 : vector<1x1x384xf32> to vector<1x384xf32>
    %14 = vector.broadcast %13 : vector<1x384xf32> to vector<8x384xf32>
    %15 = arith.mulf %11, %14 : vector<8x384xf32>
    %c0_11 = arith.constant 0 : index
    %c0_12 = arith.constant 0 : index
    %c0_13 = arith.constant 0 : index
    %16 = vector.load %arg5[%c0_11, %c0_12, %c0_13] : memref<1x1x384xf32, #tpu.memory_space<vmem>>, vector<1x1x384xf32>
    %17 = vector.shape_cast %16 : vector<1x1x384xf32> to vector<1x384xf32>
    %18 = vector.extract_strided_slice %15 {offsets = [0, 0], sizes = [8, 256], strides = [1, 1]} : vector<8x384xf32> to vector<8x256xf32>
    %cst_14 = arith.constant 0.000000e+00 : f32
    %19 = vector.shape_cast %3 : vector<1x256xi1> to vector<1x256xi1>
    %20 = vector.broadcast %19 : vector<1x256xi1> to vector<8x256xi1>
    %21 = vector.broadcast %cst_14 : f32 to vector<8x256xf32>
    %22 = arith.select %20, %21, %18 : vector<8x256xi1>, vector<8x256xf32>
    %23 = vector.extract_strided_slice %17 {offsets = [0, 0], sizes = [1, 256], strides = [1, 1]} : vector<1x384xf32> to vector<1x256xf32>
    %24 = arith.ori %7, %3 : vector<1x256xi1>
    %cst_15 = arith.constant 0xFF800000 : f32
    %25 = vector.broadcast %cst_15 : f32 to vector<1x256xf32>
    %26 = arith.select %24, %25, %23 : vector<1x256xi1>, vector<1x256xf32>
    %27 = vector.extract_strided_slice %15 {offsets = [0, 1], sizes = [8, 256], strides = [1, 1]} : vector<8x384xf32> to vector<8x256xf32>
    %28 = vector.extract_strided_slice %17 {offsets = [0, 1], sizes = [1, 256], strides = [1, 1]} : vector<1x384xf32> to vector<1x256xf32>
    %cst_16 = arith.constant 0xFF800000 : f32
    %29 = vector.broadcast %cst_16 : f32 to vector<1x256xf32>
    %30 = arith.select %7, %29, %28 : vector<1x256xi1>, vector<1x256xf32>
    %31 = arith.maximumf %26, %30 : vector<1x256xf32>
    %32 = vector.extract_strided_slice %15 {offsets = [0, 2], sizes = [8, 256], strides = [1, 1]} : vector<8x384xf32> to vector<8x256xf32>
    %cst_17 = arith.constant 0.000000e+00 : f32
    %33 = vector.shape_cast %5 : vector<1x256xi1> to vector<1x256xi1>
    %34 = vector.broadcast %33 : vector<1x256xi1> to vector<8x256xi1>
    %35 = vector.broadcast %cst_17 : f32 to vector<8x256xf32>
    %36 = arith.select %34, %35, %32 : vector<8x256xi1>, vector<8x256xf32>
    %37 = vector.extract_strided_slice %17 {offsets = [0, 2], sizes = [1, 256], strides = [1, 1]} : vector<1x384xf32> to vector<1x256xf32>
    %38 = arith.ori %7, %5 : vector<1x256xi1>
    %cst_18 = arith.constant 0xFF800000 : f32
    %39 = vector.broadcast %cst_18 : f32 to vector<1x256xf32>
    %40 = arith.select %38, %39, %37 : vector<1x256xi1>, vector<1x256xf32>
    %41 = arith.maximumf %31, %40 : vector<1x256xf32>
    %42 = vector.extract_strided_slice %15 {offsets = [0, 16], sizes = [8, 256], strides = [1, 1]} : vector<8x384xf32> to vector<8x256xf32>
    %cst_19 = arith.constant 0.000000e+00 : f32
    %43 = vector.shape_cast %3 : vector<1x256xi1> to vector<1x256xi1>
    %44 = vector.broadcast %43 : vector<1x256xi1> to vector<8x256xi1>
    %45 = vector.broadcast %cst_19 : f32 to vector<8x256xf32>
    %46 = arith.select %44, %45, %42 : vector<8x256xi1>, vector<8x256xf32>
    %47 = vector.extract_strided_slice %17 {offsets = [0, 16], sizes = [1, 256], strides = [1, 1]} : vector<1x384xf32> to vector<1x256xf32>
    %cst_20 = arith.constant 0xFF800000 : f32
    %48 = vector.broadcast %cst_20 : f32 to vector<1x256xf32>
    %49 = arith.select %3, %48, %47 : vector<1x256xi1>, vector<1x256xf32>
    %50 = arith.maximumf %41, %49 : vector<1x256xf32>
    %51 = vector.extract_strided_slice %15 {offsets = [0, 17], sizes = [8, 256], strides = [1, 1]} : vector<8x384xf32> to vector<8x256xf32>
    %52 = vector.extract_strided_slice %17 {offsets = [0, 17], sizes = [1, 256], strides = [1, 1]} : vector<1x384xf32> to vector<1x256xf32>
    %53 = arith.maximumf %50, %52 : vector<1x256xf32>
    %54 = vector.extract_strided_slice %15 {offsets = [0, 18], sizes = [8, 256], strides = [1, 1]} : vector<8x384xf32> to vector<8x256xf32>
    %cst_21 = arith.constant 0.000000e+00 : f32
    %55 = vector.shape_cast %5 : vector<1x256xi1> to vector<1x256xi1>
    %56 = vector.broadcast %55 : vector<1x256xi1> to vector<8x256xi1>
    %57 = vector.broadcast %cst_21 : f32 to vector<8x256xf32>
    %58 = arith.select %56, %57, %54 : vector<8x256xi1>, vector<8x256xf32>
    %59 = vector.extract_strided_slice %17 {offsets = [0, 18], sizes = [1, 256], strides = [1, 1]} : vector<1x384xf32> to vector<1x256xf32>
    %cst_22 = arith.constant 0xFF800000 : f32
    %60 = vector.broadcast %cst_22 : f32 to vector<1x256xf32>
    %61 = arith.select %5, %60, %59 : vector<1x256xi1>, vector<1x256xf32>
    %62 = arith.maximumf %53, %61 : vector<1x256xf32>
    %63 = vector.extract_strided_slice %15 {offsets = [0, 32], sizes = [8, 256], strides = [1, 1]} : vector<8x384xf32> to vector<8x256xf32>
    %cst_23 = arith.constant 0.000000e+00 : f32
    %64 = vector.shape_cast %3 : vector<1x256xi1> to vector<1x256xi1>
    %65 = vector.broadcast %64 : vector<1x256xi1> to vector<8x256xi1>
    %66 = vector.broadcast %cst_23 : f32 to vector<8x256xf32>
    %67 = arith.select %65, %66, %63 : vector<8x256xi1>, vector<8x256xf32>
    %68 = vector.extract_strided_slice %17 {offsets = [0, 32], sizes = [1, 256], strides = [1, 1]} : vector<1x384xf32> to vector<1x256xf32>
    %69 = arith.ori %9, %3 : vector<1x256xi1>
    %cst_24 = arith.constant 0xFF800000 : f32
    %70 = vector.broadcast %cst_24 : f32 to vector<1x256xf32>
    %71 = arith.select %69, %70, %68 : vector<1x256xi1>, vector<1x256xf32>
    %72 = arith.maximumf %62, %71 : vector<1x256xf32>
    %73 = vector.extract_strided_slice %15 {offsets = [0, 33], sizes = [8, 256], strides = [1, 1]} : vector<8x384xf32> to vector<8x256xf32>
    %74 = vector.extract_strided_slice %17 {offsets = [0, 33], sizes = [1, 256], strides = [1, 1]} : vector<1x384xf32> to vector<1x256xf32>
    %cst_25 = arith.constant 0xFF800000 : f32
    %75 = vector.broadcast %cst_25 : f32 to vector<1x256xf32>
    %76 = arith.select %9, %75, %74 : vector<1x256xi1>, vector<1x256xf32>
    %77 = arith.maximumf %72, %76 : vector<1x256xf32>
    %78 = vector.extract_strided_slice %15 {offsets = [0, 34], sizes = [8, 256], strides = [1, 1]} : vector<8x384xf32> to vector<8x256xf32>
    %cst_26 = arith.constant 0.000000e+00 : f32
    %79 = vector.shape_cast %5 : vector<1x256xi1> to vector<1x256xi1>
    %80 = vector.broadcast %79 : vector<1x256xi1> to vector<8x256xi1>
    %81 = vector.broadcast %cst_26 : f32 to vector<8x256xf32>
    %82 = arith.select %80, %81, %78 : vector<8x256xi1>, vector<8x256xf32>
    %83 = vector.extract_strided_slice %17 {offsets = [0, 34], sizes = [1, 256], strides = [1, 1]} : vector<1x384xf32> to vector<1x256xf32>
    %84 = arith.ori %9, %5 : vector<1x256xi1>
    %cst_27 = arith.constant 0xFF800000 : f32
    %85 = vector.broadcast %cst_27 : f32 to vector<1x256xf32>
    %86 = arith.select %84, %85, %83 : vector<1x256xi1>, vector<1x256xf32>
    %87 = arith.maximumf %77, %86 : vector<1x256xf32>
    %88 = tpu.concatenate %22, %27, %36, %46, %51, %58, %67, %73, %82 in 0 : vector<8x256xf32>, vector<8x256xf32>, vector<8x256xf32>, vector<8x256xf32>, vector<8x256xf32>, vector<8x256xf32>, vector<8x256xf32>, vector<8x256xf32>, vector<8x256xf32> -> vector<72x256xf32>
    %c0_28 = arith.constant 0 : index
    %c0_29 = arith.constant 0 : index
    %89 = vector.load %arg1[%c0_28, %c0_29] : memref<8x72xf32, #tpu.memory_space<vmem>>, vector<8x72xf32>
    %cst_30 = arith.constant dense<0.000000e+00> : vector<8x256xf32>
    %90 = tpu.matmul %89, %88, %cst_30 {dimension_numbers = #tpu.dot_dimension_numbers<[1], [0], [0], [1], [0, 0, 1, 1], [], []>} : vector<8x72xf32>, vector<72x256xf32>, vector<8x256xf32> -> vector<8x256xf32>
    %c0_31 = arith.constant 0 : index
    %c0_32 = arith.constant 0 : index
    %91 = vector.load %arg2[%c0_31, %c0_32] : memref<8x1xf32, #tpu.memory_space<vmem>>, vector<8x1xf32>
    %92 = vector.broadcast %91 : vector<8x1xf32> to vector<8x256xf32>
    %93 = arith.addf %90, %92 : vector<8x256xf32>
    %cst_33 = arith.constant 0.000000e+00 : f32
    %94 = vector.broadcast %cst_33 : f32 to vector<8x256xf32>
    %95 = arith.maximumf %93, %94 : vector<8x256xf32>
    %c0_34 = arith.constant 0 : index
    %c0_35 = arith.constant 0 : index
    %c0_36 = arith.constant 0 : index
    %96 = vector.load %arg6[%c0_34, %c0_35, %c0_36] : memref<1x8x256xf32, #tpu.memory_space<vmem>>, vector<1x8x256xf32>
    %97 = vector.shape_cast %96 : vector<1x8x256xf32> to vector<8x256xf32>
    %98 = vector.shape_cast %95 : vector<8x256xf32> to vector<1x8x256xf32>
    tpu.vector_store %arg6[%c0_34, %c0_35, %c0_36], %98 {strides = array<i32>} : memref<1x8x256xf32, #tpu.memory_space<vmem>>, vector<1x8x256xf32>,
    %c0_37 = arith.constant 0 : index
    %c0_38 = arith.constant 0 : index
    %c0_39 = arith.constant 0 : index
    %99 = vector.load %arg7[%c0_37, %c0_38, %c0_39] : memref<1x1x256xf32, #tpu.memory_space<vmem>>, vector<1x1x256xf32>
    %100 = vector.shape_cast %99 : vector<1x1x256xf32> to vector<1x256xf32>
    %101 = vector.shape_cast %87 : vector<1x256xf32> to vector<1x1x256xf32>
    tpu.vector_store %arg7[%c0_37, %c0_38, %c0_39], %101 {strides = array<i32>} : memref<1x1x256xf32, #tpu.memory_space<vmem>>, vector<1x1x256xf32>,
    return
  }
  func.func @transform_0(%arg0: i32) -> (i32, i32) {
    %c0_i32 = arith.constant 0 : i32
    %c0_i32_0 = arith.constant 0 : i32
    %c0_i32_1 = arith.constant 0 : i32
    return %c0_i32, %c0_i32_0 : i32, i32
  }
  func.func @transform_1(%arg0: i32) -> (i32, i32) {
    %c0_i32 = arith.constant 0 : i32
    %c0_i32_0 = arith.constant 0 : i32
    %c0_i32_1 = arith.constant 0 : i32
    return %c0_i32, %c0_i32_0 : i32, i32
  }
  func.func @transform_2(%arg0: i32) -> (i32, i32) {
    %c0_i32 = arith.constant 0 : i32
    %c0_i32_0 = arith.constant 0 : i32
    %c0_i32_1 = arith.constant 0 : i32
    return %c0_i32, %c0_i32_0 : i32, i32
  }
  func.func @transform_3(%arg0: i32) -> (i32, i32, i32) {
    %c0_i32 = arith.constant 0 : i32
    %c0_i32_0 = arith.constant 0 : i32
    %c0_i32_1 = arith.constant 0 : i32
    return %arg0, %c0_i32, %c0_i32_0 : i32, i32, i32
  }
  func.func @transform_4(%arg0: i32) -> (i32, i32, i32) {
    %c0_i32 = arith.constant 0 : i32
    %c0_i32_0 = arith.constant 0 : i32
    %c0_i32_1 = arith.constant 0 : i32
    return %arg0, %c0_i32, %c0_i32_0 : i32, i32, i32
  }
  func.func @transform_5(%arg0: i32) -> (i32, i32, i32) {
    %c0_i32 = arith.constant 0 : i32
    %c0_i32_0 = arith.constant 0 : i32
    %c0_i32_1 = arith.constant 0 : i32
    return %arg0, %c0_i32, %c0_i32_0 : i32, i32, i32
  }
  func.func @transform_6(%arg0: i32) -> (i32, i32, i32) {
    %c0_i32 = arith.constant 0 : i32
    %c0_i32_0 = arith.constant 0 : i32
    %c0_i32_1 = arith.constant 0 : i32
    return %arg0, %c0_i32, %c0_i32_0 : i32, i32, i32
  }
}

</mosaic_0001>

<llo_original>
// kernel: tpu_custom_call.1
$region0: #{tpu_custom_call.1}
  #allocation0 [shape = 'u32[]', space=smem, size = 0x4, offset = 0x4, fixed_abs, tag = 'smem constant byte address 0x4 - core index']
  #allocation1 [shape = 'u32[144,128]{1,0:T(1,128)}', space=vmem, size = 0x12000, scoped, tag = 'internal scratch']
  %s0 = inlined_call_operand.vmem [shape: f32[8,72], index: 0, kind: input, shape index: {}]
  %s1 = inlined_call_operand.vmem [shape: f32[8,1], index: 1, kind: input, shape index: {}]
  %s2 = inlined_call_operand.hbm [shape: f32[2,256], index: 2, kind: input, shape index: {}]
  %s3 = inlined_call_operand.hbm [shape: f32[2,8,384], index: 3, kind: input, shape index: {}]
  %s4 = inlined_call_operand.vmem [shape: f32[2,1,384], index: 4, kind: input, shape index: {}]
  %s5 = inlined_call_operand.hbm [shape: f32[2,8,256], index: 5, kind: output, shape index: {0}]
  %s6 = inlined_call_operand.hbm [shape: f32[2,1,256], index: 6, kind: output, shape index: {1}]
  %7 = xla_tuple %s5, %s6
  %s8 = sld [smem:[#allocation0]]
  $region69: #{tpu_custom_call.1} parent=0
    _
  %s10 = ssub.s32 1, %s8
  %s11 = scalar_select 0, %s10, %s8
  $region1: #{tpu_custom_call.1} parent=0
    #allocation2 [shape = 'u8[2048]{0}', space=vmem, size = 0x800, scoped, tag = 'input window, operand 2, single buffered']
    #allocation3 [shape = 's32[2]{0}', space=sflag, size = 0x8, scoped, tag = 'scoped memory for tpu_custom_call.1']
    #allocation4 [shape = 's32[2]{0}', space=sflag, size = 0x8, scoped, tag = 'scoped memory for tpu_custom_call.1']
    #allocation5 [shape = 'u8[24576]{0}', space=vmem, size = 0x6000, scoped, tag = 'input window, operand 3']
    #allocation6 [shape = 's32[2]{0}', space=sflag, size = 0x8, scoped, tag = 'scoped memory for tpu_custom_call.1']
    #allocation7 [shape = 'u8[16384]{0}', space=vmem, size = 0x4000, scoped, tag = 'output window, operand 0']
    #allocation8 [shape = 'u8[2048]{0}', space=vmem, size = 0x800, scoped, tag = 'output window, operand 1']
    #allocation9 [shape = 's32[2]{0}', space=sflag, size = 0x8, scoped, tag = 'scoped memory for tpu_custom_call.1']
    %12 = vsyncpa [#allocation3], 0
    %13 = vsyncpa [#allocation6], 0
    %s14 = scalar_lea.sflag [#allocation6], 1
    %15 = vsyncpa %s14, 0
    %16 = vsyncpa [#allocation4], 0
    %s17 = scalar_lea.sflag [#allocation4], 1
    %18 = vsyncpa %s17, 0
    %19 = vsyncpa [#allocation9], 0
    %s20 = scalar_lea.sflag [#allocation9], 1
    %21 = vsyncpa %s20, 0
    loop: start=0, step=1, limit=4
    $region2: #{tpu_custom_call.1} parent=1 // loop_pre_header
      _
    $region3: #{tpu_custom_call.1} parent=1 // loop_header
      %s23 = sphi 0, %s27
      %p24 = scmp.ge.s32.totalorder %s23, 4
      %s31 = sphi 0, %s31
      %s33 = sphi 0, %s31
      %s34 = sphi 0, %s33
      %s48 = sphi 0, %s34
      %s52 = sphi 0, %s52
      %s54 = sphi 0, %s52
      %s55 = sphi 0, %s54
      %s69 = sphi 0, %s55
      %s73 = sphi 0, %s73
      %s75 = sphi 0, %s73
      %s76 = sphi 0, %s75
      %s90 = sphi 0, %s76
      %s96 = sphi 0, %s98
      %s99 = sphi 0, %s96
      %s100 = sphi 0, %s99
      %s116 = sphi 0, %s100
      %s122 = sphi 0, %s124
      %s125 = sphi 0, %s122
      %s126 = sphi 0, %s125
      %s142 = sphi 0, %s126
      %s148 = sphi 0, %s150
      %s151 = sphi 0, %s148
      %s152 = sphi 0, %s151
      %s168 = sphi 0, %s152
      %s174 = sphi 0, %s176
      %s177 = sphi 0, %s174
      %s178 = sphi 0, %s177
      %s194 = sphi 0, %s178
    $region4: #{tpu_custom_call.1} parent=1 // loop_header_branch
      %26 = sbr.rel (%p24) target = $region8
    $region5: #{tpu_custom_call.1} parent=1 // loop_body
      %s28 = ssub.s32 %s23, 1
      %s29 = ssub.s32 %s23, 2
      %s30 = sadd.s32 %s23, 1
      %s32 = sadd.s32 %s31, 1
      %p35 = scmp.eq.s32.totalorder %s23, 1
      %p36 = scmp.ne.s32.totalorder %s31, %s33
      %p37 = scmp.eq.s32.totalorder %s23, 0
      %p38 = por %p36, %p37
      %p39 = scmp.ne.s32.totalorder %s31, %s33
      %p40 = scmp.eq.s32.totalorder %s28, 1
      %p41 = por %p39, %p40
      %p42 = scmp.ne.s32.totalorder %s33, %s34
      %p43 = scmp.eq.s32.totalorder %s28, 0
      %p44 = por %p42, %p43
      %p45 = scmp.ne.s32.totalorder %s33, %s34
      %p46 = scmp.eq.s32.totalorder %s29, 1
      %p47 = por %p45, %p46
      %p49 = scmp.ne.s32.totalorder %s34, %s48
      %p50 = scmp.eq.s32.totalorder %s29, 0
      %p51 = por %p49, %p50
      %s53 = sadd.s32 %s52, 1
      %p56 = scmp.eq.s32.totalorder %s23, 1
      %p57 = scmp.ne.s32.totalorder %s52, %s54
      %p58 = scmp.eq.s32.totalorder %s23, 0
      %p59 = por %p57, %p58
      %p60 = scmp.ne.s32.totalorder %s52, %s54
      %p61 = scmp.eq.s32.totalorder %s28, 1
      %p62 = por %p60, %p61
      %p63 = scmp.ne.s32.totalorder %s54, %s55
      %p64 = scmp.eq.s32.totalorder %s28, 0
      %p65 = por %p63, %p64
      %p66 = scmp.ne.s32.totalorder %s54, %s55
      %p67 = scmp.eq.s32.totalorder %s29, 1
      %p68 = por %p66, %p67
      %p70 = scmp.ne.s32.totalorder %s55, %s69
      %p71 = scmp.eq.s32.totalorder %s29, 0
      %p72 = por %p70, %p71
      %s74 = sadd.s32 %s73, 1
      %p77 = scmp.eq.s32.totalorder %s23, 1
      %p78 = scmp.ne.s32.totalorder %s73, %s75
      %p79 = scmp.eq.s32.totalorder %s23, 0
      %p80 = por %p78, %p79
      %p81 = scmp.ne.s32.totalorder %s73, %s75
      %p82 = scmp.eq.s32.totalorder %s28, 1
      %p83 = por %p81, %p82
      %p84 = scmp.ne.s32.totalorder %s75, %s76
      %p85 = scmp.eq.s32.totalorder %s28, 0
      %p86 = por %p84, %p85
      %p87 = scmp.ne.s32.totalorder %s75, %s76
      %p88 = scmp.eq.s32.totalorder %s29, 1
      %p89 = por %p87, %p88
      %p91 = scmp.ne.s32.totalorder %s76, %s90
      %p92 = scmp.eq.s32.totalorder %s29, 0
      %p93 = por %p91, %p92
      %s94 = ssub.s32 %s23, %s30
      %p95 = scmp.eq.s32.totalorder %s94, 0
      %s97 = sadd.s32 %s96, 1
      %s98 = scalar_select %p95, %s96, %s97
      %p101 = pneg %p95
      %p102 = scmp.eq.s32.totalorder %s23, 1
      %p103 = por %p101, %p102
      %p104 = scmp.ne.s32.totalorder %s96, %s99
      %p105 = scmp.eq.s32.totalorder %s23, 0
      %p106 = por %p104, %p105
      %p107 = scmp.ne.s32.totalorder %s96, %s99
      %p108 = scmp.eq.s32.totalorder %s28, 1
      %p109 = por %p107, %p108
      %p110 = scmp.ne.s32.totalorder %s99, %s100
      %p111 = scmp.eq.s32.totalorder %s28, 0
      %p112 = por %p110, %p111
      %p113 = scmp.ne.s32.totalorder %s99, %s100
      %p114 = scmp.eq.s32.totalorder %s29, 1
      %p115 = por %p113, %p114
      %p117 = scmp.ne.s32.totalorder %s100, %s116
      %p118 = scmp.eq.s32.totalorder %s29, 0
      %p119 = por %p117, %p118
      %s120 = ssub.s32 %s23, %s30
      %p121 = scmp.eq.s32.totalorder %s120, 0
      %s123 = sadd.s32 %s122, 1
      %s124 = scalar_select %p121, %s122, %s123
      %p127 = pneg %p121
      %p128 = scmp.eq.s32.totalorder %s23, 1
      %p129 = por %p127, %p128
      %p130 = scmp.ne.s32.totalorder %s122, %s125
      %p131 = scmp.eq.s32.totalorder %s23, 0
      %p132 = por %p130, %p131
      %p133 = scmp.ne.s32.totalorder %s122, %s125
      %p134 = scmp.eq.s32.totalorder %s28, 1
      %p135 = por %p133, %p134
      %p136 = scmp.ne.s32.totalorder %s125, %s126
      %p137 = scmp.eq.s32.totalorder %s28, 0
      %p138 = por %p136, %p137
      %p139 = scmp.ne.s32.totalorder %s125, %s126
      %p140 = scmp.eq.s32.totalorder %s29, 1
      %p141 = por %p139, %p140
      %p143 = scmp.ne.s32.totalorder %s126, %s142
      %p144 = scmp.eq.s32.totalorder %s29, 0
      %p145 = por %p143, %p144
      %s146 = ssub.s32 %s23, %s30
      %p147 = scmp.eq.s32.totalorder %s146, 0
      %s149 = sadd.s32 %s148, 1
      %s150 = scalar_select %p147, %s148, %s149
      %p153 = pneg %p147
      %p154 = scmp.eq.s32.totalorder %s23, 1
      %p155 = por %p153, %p154
      %p156 = scmp.ne.s32.totalorder %s148, %s151
      %p157 = scmp.eq.s32.totalorder %s23, 0
      %p158 = por %p156, %p157
      %p159 = scmp.ne.s32.totalorder %s148, %s151
      %p160 = scmp.eq.s32.totalorder %s28, 1
      %p161 = por %p159, %p160
      %p162 = scmp.ne.s32.totalorder %s151, %s152
      %p163 = scmp.eq.s32.totalorder %s28, 0
      %p164 = por %p162, %p163
      %p165 = scmp.ne.s32.totalorder %s151, %s152
      %p166 = scmp.eq.s32.totalorder %s29, 1
      %p167 = por %p165, %p166
      %p169 = scmp.ne.s32.totalorder %s152, %s168
      %p170 = scmp.eq.s32.totalorder %s29, 0
      %p171 = por %p169, %p170
      %s172 = ssub.s32 %s23, %s30
      %p173 = scmp.eq.s32.totalorder %s172, 0
      %s175 = sadd.s32 %s174, 1
      %s176 = scalar_select %p173, %s174, %s175
      %p179 = pneg %p173
      %p180 = scmp.eq.s32.totalorder %s23, 1
      %p181 = por %p179, %p180
      %p182 = scmp.ne.s32.totalorder %s174, %s177
      %p183 = scmp.eq.s32.totalorder %s23, 0
      %p184 = por %p182, %p183
      %p185 = scmp.ne.s32.totalorder %s174, %s177
      %p186 = scmp.eq.s32.totalorder %s28, 1
      %p187 = por %p185, %p186
      %p188 = scmp.ne.s32.totalorder %s177, %s178
      %p189 = scmp.eq.s32.totalorder %s28, 0
      %p190 = por %p188, %p189
      %p191 = scmp.ne.s32.totalorder %s177, %s178
      %p192 = scmp.eq.s32.totalorder %s29, 1
      %p193 = por %p191, %p192
      %p195 = scmp.ne.s32.totalorder %s178, %s194
      %p196 = scmp.eq.s32.totalorder %s29, 0
      %p197 = por %p195, %p196
      %p198 = scmp.le.s32.totalorder 1, %s23
      %p199 = scmp.lt.s32.totalorder %s23, 3
      %p200 = pnand %p198, %p199
      %p201 = pneg %p200
      // Predicated region
      $region9: #{tpu_custom_call.1} parent=5 // pred_check
        _
      $region10: #{tpu_custom_call.1} parent=5 // pred_check_branch
        %203 = sbr.rel (%p200) target = $region12
      $region11: #{tpu_custom_call.1} parent=5 // pred_region
        %s204 = ssub.s32 %s23, 1
        // Predicated region
        $region13: #{tpu_custom_call.1} parent=11 // pred_check
          %p205 = pneg %p44
        $region14: #{tpu_custom_call.1} parent=11 // pred_check_branch
          %207 = sbr.rel (%p205) target = $region16
        $region15: #{tpu_custom_call.1} parent=11 // pred_region
          _
        $region16: #{tpu_custom_call.1} parent=11 // pred_fallthru
          _
        // Predicated region
        $region17: #{tpu_custom_call.1} parent=11 // pred_check
          %p208 = pneg %p65
        $region18: #{tpu_custom_call.1} parent=11 // pred_check_branch
          %210 = sbr.rel (%p208) target = $region20
        $region19: #{tpu_custom_call.1} parent=11 // pred_region
          _
        $region20: #{tpu_custom_call.1} parent=11 // pred_fallthru
          _
        // Predicated region
        $region21: #{tpu_custom_call.1} parent=11 // pred_check
          %p211 = pneg %p86
        $region22: #{tpu_custom_call.1} parent=11 // pred_check_branch
          %213 = sbr.rel (%p211) target = $region24
        $region23: #{tpu_custom_call.1} parent=11 // pred_region
          %s215 = ssub.s32 64, 64
          %216 = vsyncadd [#allocation3], %s215
          %s218 = sshll.u32 [#allocation2], 4
          %s219 = int_to_ptr.vmem [resolvable:$true] %s218
          %221 = dma.hbm_to_vmem [thread:$0]  %s2, 64, %s219, [#allocation3]
        $region24: #{tpu_custom_call.1} parent=11 // pred_fallthru
          _
      $region12: #{tpu_custom_call.1} parent=5 // pred_fallthru
        _
      %p222 = scmp.lt.s32.totalorder %s23, 2
      // Predicated region
      $region25: #{tpu_custom_call.1} parent=5 // pred_check
        %p223 = pneg %p222
      $region26: #{tpu_custom_call.1} parent=5 // pred_check_branch
        %225 = sbr.rel (%p223) target = $region28
      $region27: #{tpu_custom_call.1} parent=5 // pred_region
        // Predicated region
        $region29: #{tpu_custom_call.1} parent=27 // pred_check
          %p226 = pneg %p106
        $region30: #{tpu_custom_call.1} parent=27 // pred_check_branch
          %228 = sbr.rel (%p226) target = $region32
        $region31: #{tpu_custom_call.1} parent=27 // pred_region
          %s229 = sand.u32 %s96, 1
          %s230 = scalar_lea.sflag [#allocation6], %s229
          %s231 = sand.u32 %s96, 1
          %s232 = smul.addr %s231, 24
          %s233 = scalar_lea.vmem [#allocation5], %s232
          %s235 = ssub.s32 384, 384
          %236 = vsyncadd %s230, %s235
          %s237 = smul.addr %s23, 3
          %s238 = smul.addr %s237, 128
          %s239 = scalar_lea.hbm %s3, %s238
          %s241 = sshll.u32 %s233, 4
          %s242 = int_to_ptr.vmem [resolvable:$true] %s241
          %244 = dma.hbm_to_vmem [thread:$0]  %s239, 384, %s242, %s230
        $region32: #{tpu_custom_call.1} parent=27 // pred_fallthru
          _
        // Predicated region
        $region33: #{tpu_custom_call.1} parent=27 // pred_check
          %p245 = pneg %p132
        $region34: #{tpu_custom_call.1} parent=27 // pred_check_branch
          %247 = sbr.rel (%p245) target = $region36
        $region35: #{tpu_custom_call.1} parent=27 // pred_region
          %p248 = scmp.lt.s32.totalorder %s23, 1
          %s249 = scalar_select %p248, %s23, 1
          %s250 = smul.addr %s249, 3
          %s251 = scalar_lea.vmem %s4, %s250
        $region36: #{tpu_custom_call.1} parent=27 // pred_fallthru
          _
      $region28: #{tpu_custom_call.1} parent=5 // pred_fallthru
        _
      %p252 = scmp.le.s32.totalorder 1, %s23
      %p253 = scmp.lt.s32.totalorder %s23, 3
      %p254 = pnand %p252, %p253
      %p255 = pneg %p254
      // Predicated region
      $region37: #{tpu_custom_call.1} parent=5 // pred_check
        _
      $region38: #{tpu_custom_call.1} parent=5 // pred_check_branch
        %257 = sbr.rel (%p254) target = $region40
      $region39: #{tpu_custom_call.1} parent=5 // pred_region
        %s258 = ssub.s32 %s23, 1
        // Predicated region
        $region41: #{tpu_custom_call.1} parent=39 // pred_check
          %p259 = pneg %p86
        $region42: #{tpu_custom_call.1} parent=39 // pred_check_branch
          %261 = sbr.rel (%p259) target = $region44
        $region43: #{tpu_custom_call.1} parent=39 // pred_region
          %262 = dma.done [#allocation3], 64
        $region44: #{tpu_custom_call.1} parent=39 // pred_fallthru
          _
        %s263 = sand.u32 %s99, 1
        %s264 = scalar_lea.sflag [#allocation6], %s263
        %s265 = sand.u32 %s99, 1
        %s266 = smul.addr %s265, 24
        %s267 = scalar_lea.vmem [#allocation5], %s266
        // Predicated region
        $region45: #{tpu_custom_call.1} parent=39 // pred_check
          %p268 = pneg %p112
        $region46: #{tpu_custom_call.1} parent=39 // pred_check_branch
          %270 = sbr.rel (%p268) target = $region48
        $region47: #{tpu_custom_call.1} parent=39 // pred_region
          %271 = dma.done %s264, 384
        $region48: #{tpu_custom_call.1} parent=39 // pred_fallthru
          _
        %p272 = pneg %p44
        %p273 = pneg %p41
        %p274 = pneg %p65
        %p275 = pneg %p62
        %p276 = pneg %p86
        %p277 = pneg %p83
        %s278 = sand.u32 %s99, 1
        %s279 = scalar_lea.sflag [#allocation6], %s278
        %s280 = sand.u32 %s99, 1
        %s281 = smul.addr %s280, 24
        %s282 = scalar_lea.vmem [#allocation5], %s281
        %p283 = pneg %p112
        %p284 = pneg %p109
        %p285 = scmp.lt.s32.totalorder %s28, 1
        %s286 = scalar_select %p285, %s28, 1
        %s287 = smul.addr %s286, 3
        %s288 = scalar_lea.vmem %s4, %s287
        %p289 = pneg %p138
        %p290 = pneg %p135
        %p291 = pneg %p164
        %p292 = pneg %p161
        %s293 = sand.u32 %s151, 1
        %s294 = scalar_lea.sflag [#allocation4], %s293
        %s295 = sand.u32 %s151, 1
        %s296 = smul.addr %s295, 16
        %s297 = scalar_lea.vmem [#allocation7], %s296
        %p298 = pneg %p190
        %p299 = pneg %p187
        %s300 = sand.u32 %s177, 1
        %s301 = scalar_lea.sflag [#allocation9], %s300
        %s302 = sand.u32 %s177, 1
        %s303 = smul.addr %s302, 2
        %s304 = scalar_lea.vmem [#allocation8], %s303
        %p305 = scmp.lt.s32.totalorder %s28, 1
        %s306 = scalar_select %p305, %s28, 1
        %s307 = smul.addr %s306, 3
        %s308 = scalar_lea.vmem %s4, %s307
        %v309 = vld [vmem:[#allocation2] ss:$2 sm:$0x3]
        %s310 = scalar_lea.vmem [#allocation2], 1
        %v311 = vld [vmem:[%s310] ss:$2 sm:$0x3]
        %vm312 = vcmp.eq.f32.partialorder %v309, 0.0
        %vm313 = vcmp.eq.f32.partialorder %v309, 15.0
        %vm314 = vcmp.eq.f32.partialorder %v311, 0.0
        %vm315 = vcmp.eq.f32.partialorder %v311, 15.0
        %v316 = vld [vmem:[%s267] sm:$0xff]
        %v317 = vld [vmem:[%s267 + $0x8] sm:$0xff]
        %v318 = vld [vmem:[%s267 + $0x10] sm:$0xff]
        %v319 = vld [vmem:[%s308] sm:$0x7]
        %v321 = vlaneseq
        %v322 = vshrl.u32 %v321, 7
        %v323 = vsub.s32 0, %v322
        %v324 = vrot.slane %v319, %v323
        %v325 = vlaneseq
        %v326 = vshrl.u32 %v325, 7
        %v327 = vsub.s32 1, %v326
        %v328 = vrot.slane %v319, %v327
        %v329 = vlaneseq
        %v330 = vshrl.u32 %v329, 7
        %v331 = vsub.s32 2, %v330
        %v332 = vrot.slane %v319, %v331
        %v336 = vmul.f32 %v316, %v324
        %v337 = vmul.f32 %v317, %v328
        %v338 = vmul.f32 %v318, %v332
        %v339 = vsel %vm312, 1, 0
        %v340 = vlaneseq
        %v341 = vshrl.u32 %v340, 7
        %v342 = vsub.s32 0, %v341
        %v343 = vrot.slane %v339, %v342
        %v344 = vlaneseq
        %v345 = vshrl.u32 %v344, 7
        %v346 = vsub.s32 1, %v345
        %v347 = vrot.slane %v339, %v346
        %vm348 = vcmp.eq.s32.totalorder %v343, 1
        %vm349 = vcmp.eq.s32.totalorder %v347, 1
        %v350 = vsel %vm348, 0.0, %v336
        %v351 = vsel %vm349, 0.0, %v337
        %vm352 = vmor %vm314, %vm312
        %v353 = vsel %vm352, -inf, %v319
        %354 = vrot.lane.b32.xlu0 %v319, 127
        %v355 = vpop.permute.xlu0 %354
        %v356 = vrot.slane %v355, 1
        %vm357 = vcmask 1039360
        %v358 = vsel %vm357, %v355, %v356
        %v360 = vsel %vm314, -inf, %v358
        %v361 = vmax.f32 %v353, %v360
        %v362 = vsel %vm313, 1, 0
        %v363 = vlaneseq
        %v364 = vshrl.u32 %v363, 7
        %v365 = vsub.s32 0, %v364
        %v366 = vrot.slane %v362, %v365
        %v367 = vlaneseq
        %v368 = vshrl.u32 %v367, 7
        %v369 = vsub.s32 1, %v368
        %v370 = vrot.slane %v362, %v369
        %vm371 = vcmp.eq.s32.totalorder %v366, 1
        %vm372 = vcmp.eq.s32.totalorder %v370, 1
        %376 = vrot.lane.b32.xlu0 %v336, 126
        %v377 = vpop.permute.xlu0 %376
        %378 = vrot.lane.b32.xlu0 %v337, 126
        %v379 = vpop.permute.xlu0 %378
        %380 = vrot.lane.b32.xlu0 %v338, 126
        %v381 = vpop.permute.xlu0 %380
        %vm382 = vcmask 1031168
        %v383 = vsel %vm382, %v377, %v379
        %v384 = vsel %vm382, %v379, %v381
        %v387 = vsel %vm371, 0.0, %v383
        %v388 = vsel %vm372, 0.0, %v384
        %vm389 = vmor %vm314, %vm313
        %390 = vrot.lane.b32.xlu0 %v319, 126
        %v391 = vpop.permute.xlu0 %390
        %v392 = vrot.slane %v391, 1
        %v393 = vsel %vm382, %v391, %v392
        %v395 = vsel %vm389, -inf, %v393
        %v396 = vmax.f32 %v361, %v395
        %397 = vrot.lane.b32.xlu0 %v336, 112
        %v398 = vpop.permute.xlu0 %397
        %399 = vrot.lane.b32.xlu0 %v337, 112
        %v400 = vpop.permute.xlu0 %399
        %401 = vrot.lane.b32.xlu0 %v338, 112
        %v402 = vpop.permute.xlu0 %401
        %vm403 = vcmask 916480
        %v404 = vsel %vm403, %v398, %v400
        %v405 = vsel %vm403, %v400, %v402
        %v408 = vsel %vm348, 0.0, %v404
        %v409 = vsel %vm349, 0.0, %v405
        %410 = vrot.lane.b32.xlu0 %v319, 112
        %v411 = vpop.permute.xlu0 %410
        %v412 = vrot.slane %v411, 1
        %v413 = vsel %vm403, %v411, %v412
        %v415 = vsel %vm312, -inf, %v413
        %v416 = vmax.f32 %v396, %v415
        %417 = vrot.lane.b32.xlu0 %v319, 111
        %v418 = vpop.permute.xlu0 %417
        %v419 = vrot.slane %v418, 1
        %vm420 = vcmask 908288
        %v421 = vsel %vm420, %v418, %v419
        %v423 = vmax.f32 %v416, %v421
        %424 = vrot.lane.b32.xlu0 %v336, 110
        %v425 = vpop.permute.xlu0 %424
        %426 = vrot.lane.b32.xlu0 %v337, 110
        %v427 = vpop.permute.xlu0 %426
        %428 = vrot.lane.b32.xlu0 %v338, 110
        %v429 = vpop.permute.xlu0 %428
        %vm430 = vcmask 900096
        %v431 = vsel %vm430, %v425, %v427
        %v432 = vsel %vm430, %v427, %v429
        %v435 = vsel %vm371, 0.0, %v431
        %v436 = vsel %vm372, 0.0, %v432
        %437 = vrot.lane.b32.xlu0 %v319, 110
        %v438 = vpop.permute.xlu0 %437
        %v439 = vrot.slane %v438, 1
        %v440 = vsel %vm430, %v438, %v439
        %v442 = vsel %vm313, -inf, %v440
        %v443 = vmax.f32 %v423, %v442
        %444 = vrot.lane.b32.xlu0 %v336, 96
        %v445 = vpop.permute.xlu0 %444
        %446 = vrot.lane.b32.xlu0 %v337, 96
        %v447 = vpop.permute.xlu0 %446
        %448 = vrot.lane.b32.xlu0 %v338, 96
        %v449 = vpop.permute.xlu0 %448
        %vm450 = vcmask 785408
        %v451 = vsel %vm450, %v445, %v447
        %v452 = vsel %vm450, %v447, %v449
        %v455 = vsel %vm348, 0.0, %v451
        %v456 = vsel %vm349, 0.0, %v452
        %vm457 = vmor %vm315, %vm312
        %458 = vrot.lane.b32.xlu0 %v319, 96
        %v459 = vpop.permute.xlu0 %458
        %v460 = vrot.slane %v459, 1
        %v461 = vsel %vm450, %v459, %v460
        %v463 = vsel %vm457, -inf, %v461
        %v464 = vmax.f32 %v443, %v463
        %465 = vrot.lane.b32.xlu0 %v319, 95
        %v466 = vpop.permute.xlu0 %465
        %v467 = vrot.slane %v466, 1
        %vm468 = vcmask 777216
        %v469 = vsel %vm468, %v466, %v467
        %v471 = vsel %vm315, -inf, %v469
        %v472 = vmax.f32 %v464, %v471
        %473 = vrot.lane.b32.xlu0 %v336, 94
        %v474 = vpop.permute.xlu0 %473
        %475 = vrot.lane.b32.xlu0 %v337, 94
        %v476 = vpop.permute.xlu0 %475
        %477 = vrot.lane.b32.xlu0 %v338, 94
        %v478 = vpop.permute.xlu0 %477
        %vm479 = vcmask 769024
        %v480 = vsel %vm479, %v474, %v476
        %v481 = vsel %vm479, %v476, %v478
        %v484 = vsel %vm371, 0.0, %v480
        %v485 = vsel %vm372, 0.0, %v481
        %vm486 = vmor %vm315, %vm313
        %487 = vrot.lane.b32.xlu0 %v319, 94
        %v488 = vpop.permute.xlu0 %487
        %v489 = vrot.slane %v488, 1
        %v490 = vsel %vm479, %v488, %v489
        %v492 = vsel %vm486, -inf, %v490
        %v493 = vmax.f32 %v472, %v492
        %494 = vrot.lane.b32.xlu0 %v336, 127
        %v495 = vpop.permute.xlu0 %494
        %496 = vrot.lane.b32.xlu0 %v337, 127
        %v497 = vpop.permute.xlu0 %496
        %498 = vrot.lane.b32.xlu0 %v338, 127
        %v499 = vpop.permute.xlu0 %498
        %v500 = vsel %vm357, %v495, %v497
        %v501 = vsel %vm357, %v497, %v499
        %504 = vrot.lane.b32.xlu0 %v336, 111
        %v505 = vpop.permute.xlu0 %504
        %506 = vrot.lane.b32.xlu0 %v337, 111
        %v507 = vpop.permute.xlu0 %506
        %508 = vrot.lane.b32.xlu0 %v338, 111
        %v509 = vpop.permute.xlu0 %508
        %v510 = vsel %vm420, %v505, %v507
        %v511 = vsel %vm420, %v507, %v509
        %514 = vrot.lane.b32.xlu0 %v336, 95
        %v515 = vpop.permute.xlu0 %514
        %516 = vrot.lane.b32.xlu0 %v337, 95
        %v517 = vpop.permute.xlu0 %516
        %518 = vrot.lane.b32.xlu0 %v338, 95
        %v519 = vpop.permute.xlu0 %518
        %v520 = vsel %vm468, %v515, %v517
        %v521 = vsel %vm468, %v517, %v519
        %v524 = vld [vmem:[%s0] sm:$0xff]
        %v525 = vld [vmem:[%s1] sm:$0xff]
        %527 = vset.pattern.permute.xlu0 0
        %528 = vperm.xlu0 %527, %v525
        %v529 = vpop.permute.xlu0 %528
        %vm531 = vcmask 588800
        %v533 = vsel %vm531, %v524, 0
        %535 = vmatprep.subr.mxu0 %v351
        %536 = vmatpush1.msra.mxu0 %v350
        %537 = vmatprep.subr.mxu0 %v501
        %538 = vmatpush1.msra.mxu0 %v500
        %539 = vmatprep.subr.mxu0 %v388
        %540 = vmatpush1.msra.mxu0 %v387
        %541 = vmatprep.subr.mxu0 %v409
        %542 = vmatpush1.msra.mxu0 %v408
        %543 = vmatprep.subr.mxu0 %v511
        %544 = vmatpush1.msra.mxu0 %v510
        %545 = vmatprep.subr.mxu0 %v436
        %546 = vmatpush1.msra.mxu0 %v435
        %547 = vmatprep.subr.mxu0 %v456
        %548 = vmatpush1.msra.mxu0 %v455
        %549 = vmatprep.subr.mxu0 %v521
        %550 = vmatpush1.msra.mxu0 %v520
        %551 = vmatprep.subr.mxu0 %v485
        %552 = vmatpush1.msra.mxu0 %v484
        %553 = vmatprep.subr.mxu0 0.0
        %554 = vmatpush1.msra.mxu0 0.0
        %555 = vmatprep.subr.mxu0 0.0
        %556 = vmatpush1.msra.mxu0 0.0
        %557 = vmatprep.subr.mxu0 0.0
        %558 = vmatpush1.msra.mxu0 0.0
        %559 = vmatprep.subr.mxu0 0.0
        %560 = vmatpush1.msra.mxu0 0.0
        %561 = vmatprep.subr.mxu0 0.0
        %562 = vmatpush1.msra.mxu0 0.0
        %563 = vmatprep.subr.mxu0 0.0
        %564 = vmatpush1.msra.mxu0 0.0
        %565 = vmatprep.subr.mxu0 0.0
        %566 = vmatpush1.msra.mxu0 0.0
        %567 = vmatprep.subr.mxu0 0.0
        %568 = vmatpush1.msra.mxu0 0.0
        %569 = vmatprep.subr.mxu0 0.0
        %570 = vmatpush1.msra.mxu0 0.0
        %571 = vmatprep.subr.mxu0 0.0
        %572 = vmatpush1.msra.mxu0 0.0
        %573 = vmatprep.subr.mxu0 0.0
        %574 = vmatpush1.msra.mxu0 0.0
        %575 = vmatprep.subr.mxu0 0.0
        %576 = vmatpush1.msra.mxu0 0.0
        %577 = vmatprep.subr.mxu0 0.0
        %578 = vmatpush1.msra.mxu0 0.0
        %579 = vmatprep.subr.mxu0 0.0
        %580 = vmatpush1.msra.mxu0 0.0
        %581 = vmatprep.subr.mxu0 0.0
        %582 = vmatpush1.msra.mxu0 0.0
        %583 = vmatprep.subr.mxu0 0.0
        %584 = vmatpush1.msra.mxu0 0.0
        %585 = vmatprep.subr.mxu0 0.0
        %586 = vmatpush1.msra.mxu0 0.0
        %587 = vmatprep.subr.mxu0 0.0
        %588 = vmatpush1.msra.mxu0 0.0
        %589 = vmatprep.subr.mxu0 0.0
        %590 = vmatpush1.msra.mxu0 0.0
        %591 = vmatprep.subr.mxu0 0.0
        %592 = vmatpush1.msra.mxu0 0.0
        %593 = vmatprep.subr.mxu0 0.0
        %594 = vmatpush1.msra.mxu0 0.0
        %595 = vmatprep.subr.mxu0 0.0
        %596 = vmatpush1.msra.mxu0 0.0
        %597 = vmatprep.subr.mxu0 0.0
        %598 = vmatpush1.msra.mxu0 0.0
        %599 = vmatprep.mubr.f32.mxu0 0.0
        %600 = vmatmul.mubr.f32.gmra.mrb[0].mxu0 %v533
        %v601 = vpop.f32.mrb[0].mxu0
        %v602 = vadd.f32 %v529, %v601
        %v603 = vpop.f32.mrb[0].mxu0
        %v604 = vadd.f32 %v529, %v603
        %605 = vdwg.mxu0
        %v606 = vmax.f32 %v602, 0.0
        %v607 = vmax.f32 %v604, 0.0
        %608 = vst [vmem:[%s297] sm:$0xff] %v606
        %609 = vst [vmem:[%s297 + $0x8] sm:$0xff] %v607
        %v610 = vlaneseq
        %vm611 = vcmp.ge.s32.totalorder %v610, 0
        %vm612 = vcmp.lt.s32.totalorder %v610, 256
        %vm613 = vmand %vm611, %vm612
        %614 = vst.msk [vmem:[%s304] sm:$0x3] %vm613, %v493
        %s615 = sand.u32 %s151, 1
        %s616 = scalar_lea.sflag [#allocation4], %s615
        %s617 = sand.u32 %s151, 1
        %s618 = smul.addr %s617, 16
        %s619 = scalar_lea.vmem [#allocation7], %s618
        %s620 = sand.u32 %s177, 1
        %s621 = scalar_lea.sflag [#allocation9], %s620
        %s622 = sand.u32 %s177, 1
        %s623 = smul.addr %s622, 2
        %s624 = scalar_lea.vmem [#allocation8], %s623
        // Predicated region
        $region49: #{tpu_custom_call.1} parent=39 // pred_check
          %p625 = pneg %p161
        $region50: #{tpu_custom_call.1} parent=39 // pred_check_branch
          %627 = sbr.rel (%p625) target = $region52
        $region51: #{tpu_custom_call.1} parent=39 // pred_region
          %s629 = ssub.s32 256, 256
          %630 = vsyncadd %s616, %s629
          %s631 = smul.addr %s28, 2
          %s632 = smul.addr %s631, 128
          %s633 = scalar_lea.hbm %s5, %s632
          %s635 = sshll.u32 %s619, 4
          %s636 = int_to_ptr.vmem [resolvable:$true] %s635
          %638 = dma.vmem_to_hbm [thread:$0]  %s636, 256, %s633, %s616
        $region52: #{tpu_custom_call.1} parent=39 // pred_fallthru
          _
        // Predicated region
        $region53: #{tpu_custom_call.1} parent=39 // pred_check
          %p639 = pneg %p187
        $region54: #{tpu_custom_call.1} parent=39 // pred_check_branch
          %641 = sbr.rel (%p639) target = $region56
        $region55: #{tpu_custom_call.1} parent=39 // pred_region
          %s643 = ssub.s32 32, 32
          %644 = vsyncadd %s621, %s643
          %s645 = smul.addr %s28, 2
          %s646 = smul.addr %s645, 16
          %s647 = scalar_lea.hbm %s6, %s646
          %s649 = sshll.u32 %s624, 4
          %s650 = int_to_ptr.vmem [resolvable:$true] %s649
          %652 = dma.vmem_to_hbm [thread:$0]  %s650, 32, %s647, %s621
        $region56: #{tpu_custom_call.1} parent=39 // pred_fallthru
          _
      $region40: #{tpu_custom_call.1} parent=5 // pred_fallthru
        _
      %p653 = scmp.le.s32.totalorder 2, %s23
      // Predicated region
      $region57: #{tpu_custom_call.1} parent=5 // pred_check
        %p654 = pneg %p653
      $region58: #{tpu_custom_call.1} parent=5 // pred_check_branch
        %656 = sbr.rel (%p654) target = $region60
      $region59: #{tpu_custom_call.1} parent=5 // pred_region
        %s657 = ssub.s32 %s23, 2
        // Predicated region
        $region61: #{tpu_custom_call.1} parent=59 // pred_check
          %p658 = pneg %p167
        $region62: #{tpu_custom_call.1} parent=59 // pred_check_branch
          %660 = sbr.rel (%p658) target = $region64
        $region63: #{tpu_custom_call.1} parent=59 // pred_region
          %s661 = sand.u32 %s152, 1
          %s662 = scalar_lea.sflag [#allocation4], %s661
          %s663 = sand.u32 %s152, 1
          %s664 = smul.addr %s663, 16
          %s665 = scalar_lea.vmem [#allocation7], %s664
          %666 = dma.done %s662, 256
        $region64: #{tpu_custom_call.1} parent=59 // pred_fallthru
          _
        // Predicated region
        $region65: #{tpu_custom_call.1} parent=59 // pred_check
          %p667 = pneg %p193
        $region66: #{tpu_custom_call.1} parent=59 // pred_check_branch
          %669 = sbr.rel (%p667) target = $region68
        $region67: #{tpu_custom_call.1} parent=59 // pred_region
          %s670 = sand.u32 %s178, 1
          %s671 = scalar_lea.sflag [#allocation9], %s670
          %s672 = sand.u32 %s178, 1
          %s673 = smul.addr %s672, 2
          %s674 = scalar_lea.vmem [#allocation8], %s673
          %675 = dma.done %s671, 32
        $region68: #{tpu_custom_call.1} parent=59 // pred_fallthru
          _
      $region60: #{tpu_custom_call.1} parent=5 // pred_fallthru
        _
    $region6: #{tpu_custom_call.1} parent=1 // loop_footer
      %s27 = sadd.s32 1, %s23
    $region7: #{tpu_custom_call.1} parent=1 // loop_footer_branch
      %22 = sbr.rel target = $region3
    $region8: #{tpu_custom_call.1} parent=1 // loop_exit
      _
    %676 = vsyncpa [#allocation3], 1
    %s677 = scalar_lea.sflag [#allocation3], 1
    %678 = vsyncpa %s677, 1
    %679 = vsyncpa [#allocation6], 1
    %s680 = scalar_lea.sflag [#allocation6], 1
    %681 = vsyncpa %s680, 1
    %682 = vsyncpa [#allocation4], 1
    %s683 = scalar_lea.sflag [#allocation4], 1
    %684 = vsyncpa %s683, 1
    %685 = vsyncpa [#allocation9], 1
    %s686 = scalar_lea.sflag [#allocation9], 1
    %687 = vsyncpa %s686, 1

</llo_original>
